<compile_context>
chip_gen: v7x
topology: tpu7x:2x2x1
jax: 0.10.0
libtpu: 0.0.40
codegen_flags: <defaults>
</compile_context>

<pallas_src>
import functools

import jax
import jax.numpy as jnp
from jax import lax
from jax.experimental import pallas as pl
from jax.experimental.pallas import tpu as pltpu


def bpnn_kernel(x_ref, w1t_ref, p_ref, b2_ref, o_ref):
    # x_ref:   (TB, D) f32   -- streamed batch tile (edge tiles are clipped by Pallas)
    # w1t_ref: (H, D)  bf16  -- VMEM-resident across the grid (constant index_map)
    # p_ref:   (H, 2)  f32   -- column 0 = b1, column 1 = w2
    # b2_ref:  (1, 1)  f32   -- SMEM scalar
    # o_ref:   (1, TB) f32   -- lane-dense output slab (batch on lanes)

    x_bf = x_ref[...].astype(jnp.bfloat16)                      # in-kernel cast (VPU)

    # Layer 1 on the MXU: contract over D (last dim of both operands):
    #   (H, D) . (TB, D)^T -> (H, TB), f32 accumulation.
    h = lax.dot_general(
        w1t_ref[...], x_bf,
        dimension_numbers=(((1,), (1,)), ((), ())),
        preferred_element_type=jnp.float32)                     # (H, TB) f32

    b1 = p_ref[:, 0:1]                                          # (H, 1)
    w2 = p_ref[:, 1:2]                                          # (H, 1)
    h = jnp.maximum(h + b1, 0.0)                                # bias + ReLU (VPU, f32)

    # Layer 2 (K=10, N=1): VPU multiply + sublane reduce -> (1, TB), lane-dense.
    y = jnp.sum(h * w2, axis=0, keepdims=True) + b2_ref[0, 0]

    o_ref[...] = y.astype(o_ref.dtype)


def _round_up(n, m):
    return ((n + m - 1) // m) * m


@functools.partial(jax.jit, static_argnames=("target_tile_bytes",))
def bpnn_forward(x, w1, b1, w2, b2, *, target_tile_bytes=2 << 20):
    """x: (B, D) f32; w1: (D, H); b1: (H,); w2: (H, 1); b2: (1,). Returns (B, 1) f32."""
    B, D = x.shape
    H = w1.shape[1]

    # --- tile selection: ~target_tile_bytes of f32 x per grid step, lane-multiple ---
    tb = max(128, (target_tile_bytes // (4 * D)) // 128 * 128)
    b_pad128 = _round_up(B, 128)
    tb = min(tb, b_pad128)
    if b_pad128 >= 256:
        # Force >= 2 tiles so both v7x TensorCores get work (no-op on v5e/v6e).
        tb = min(tb, _round_up(-(-B // 2), 128))
    n_tiles = pl.cdiv(B, tb)

    # Tiny parameter staging (a few hundred bytes; not a bandwidth concern).
    w1t = w1.T.astype(jnp.bfloat16)                                      # (H, D)
    params = jnp.concatenate(
        [b1.reshape(H, 1), w2.reshape(H, 1)], axis=1).astype(jnp.float32)  # (H, 2)
    b2c = b2.reshape(1, 1).astype(jnp.float32)                           # (1, 1)

    out = pl.pallas_call(
        bpnn_kernel,
        out_shape=jax.ShapeDtypeStruct((1, B), jnp.float32),
        grid=(n_tiles,),
        in_specs=[
            pl.BlockSpec((tb, D), lambda i: (i, 0)),     # x: streamed, double-buffered
            pl.BlockSpec((H, D), lambda i: (0, 0)),      # W1^T: VMEM-resident
            pl.BlockSpec((H, 2), lambda i: (0, 0)),      # [b1 | w2]: VMEM-resident
            pl.BlockSpec(memory_space=pltpu.MemorySpace.SMEM),  # b2 scalar in SMEM
        ],
        out_specs=pl.BlockSpec((1, tb), lambda i: (0, i)),
        compiler_params=pltpu.CompilerParams(
            dimension_semantics=("parallel",),           # batch tiles -> both v7x TCs
            vmem_limit_bytes=48 * 1024 * 1024,           # headroom; <= v7x 64 MiB phys
        ),
    )(x, w1t, params, b2c)

    return out.reshape(B, 1)


if __name__ == "__main__":
    key = jax.random.PRNGKey(0)
    k_x, k_w1, k_b1, k_w2, k_b2 = jax.random.split(key, 5)

    batch = 500          # not a multiple of the tile -> exercises edge-block clipping
    input_size = 32
    hidden = 10

    x = jax.random.normal(k_x, (batch, input_size), dtype=jnp.float32)

    # PyTorch-Linear-style uniform(-1/sqrt(fan_in), 1/sqrt(fan_in)) init.
    bound1 = 1.0 / (input_size ** 0.5)
    w1 = jax.random.uniform(k_w1, (input_size, hidden), jnp.float32, -bound1, bound1)
    b1 = jax.random.uniform(k_b1, (hidden,), jnp.float32, -bound1, bound1)

    bound2 = 1.0 / (hidden ** 0.5)
    w2 = jax.random.uniform(k_w2, (hidden, 1), jnp.float32, -bound2, bound2)
    b2 = jax.random.uniform(k_b2, (1,), jnp.float32, -bound2, bound2)

    out = bpnn_forward(x, w1, b1, w2, b2)
    out = jax.block_until_ready(out)

    # Pure-JAX reference with the same bf16 rounding applied to the MXU operands;
    # layer 2 stays f32 (matches the kernel's f32 VPU path).
    xb = x.astype(jnp.bfloat16).astype(jnp.float32)
    w1b = w1.astype(jnp.bfloat16).astype(jnp.float32)
    h_ref = jnp.maximum(xb @ w1b + b1[None, :], 0.0)
    ref = jnp.sum(h_ref * w2[:, 0][None, :], axis=-1, keepdims=True) + b2[None, :]

    assert out.shape == (batch, 1)
    assert jnp.allclose(out, ref, atol=1e-4, rtol=1e-4), "mismatch vs reference"
    print("KERNEL_OK")
</pallas_src>

<mosaic_0001>
module attributes {stable_mosaic.version = 11 : i64} {
  func.func @bpnn_kernel(%arg0: i32, %arg1: memref<256x32xf32, #tpu.memory_space<vmem>>, %arg2: memref<10x32xbf16, #tpu.memory_space<vmem>>, %arg3: memref<10x2xf32, #tpu.memory_space<vmem>>, %arg4: memref<1x1xf32, #tpu.memory_space<smem>>, %arg5: memref<1x256xf32, #tpu.memory_space<vmem>>) attributes {dimension_semantics = [#tpu.dimension_semantics<parallel>], iteration_bounds = array<i64: 2>, scalar_prefetch = 0 : i64, scratch_operands = 0 : i64, tpu.core_type = #tpu.core_type<tc>, window_params = [{transform_indices = @transform_0, window_bounds = array<i64: 256, 32>}, {pipeline_mode = #tpu.pipeline_mode<synchronous>, transform_indices = @transform_1, window_bounds = array<i64: 10, 32>}, {pipeline_mode = #tpu.pipeline_mode<synchronous>, transform_indices = @transform_2, window_bounds = array<i64: 10, 2>}, {transform_indices = @transform_3, window_bounds = array<i64: 1, 1>}, {transform_indices = @transform_4, window_bounds = array<i64: 1, 256>}]} {
    %c0 = arith.constant 0 : index
    %c0_0 = arith.constant 0 : index
    %0 = vector.load %arg1[%c0, %c0_0] : memref<256x32xf32, #tpu.memory_space<vmem>>, vector<256x32xf32>
    %1 = arith.truncf %0 : vector<256x32xf32> to vector<256x32xbf16>
    %c0_1 = arith.constant 0 : index
    %c0_2 = arith.constant 0 : index
    %2 = vector.load %arg2[%c0_1, %c0_2] : memref<10x32xbf16, #tpu.memory_space<vmem>>, vector<10x32xbf16>
    %cst = arith.constant dense<0.000000e+00> : vector<10x256xf32>
    %3 = tpu.matmul %2, %1, %cst {dimension_numbers = #tpu.dot_dimension_numbers<[1], [1], [0], [0], [0, 0, 1, 0], [], []>} : vector<10x32xbf16>, vector<256x32xbf16>, vector<10x256xf32> -> vector<10x256xf32>
    %c0_3 = arith.constant 0 : index
    %c0_4 = arith.constant 0 : index
    %4 = vector.load %arg3[%c0_3, %c0_4] : memref<10x2xf32, #tpu.memory_space<vmem>>, vector<10x1xf32>
    %c0_5 = arith.constant 0 : index
    %c1 = arith.constant 1 : index
    %5 = vector.load %arg3[%c0_5, %c1] : memref<10x2xf32, #tpu.memory_space<vmem>>, vector<10x1xf32>
    %6 = vector.broadcast %4 : vector<10x1xf32> to vector<10x256xf32>
    %7 = arith.addf %3, %6 : vector<10x256xf32>
    %cst_6 = arith.constant 0.000000e+00 : f32
    %8 = vector.broadcast %cst_6 : f32 to vector<10x256xf32>
    %9 = arith.maximumf %7, %8 : vector<10x256xf32>
    %10 = vector.broadcast %5 : vector<10x1xf32> to vector<10x256xf32>
    %11 = arith.mulf %9, %10 : vector<10x256xf32>
    %cst_7 = arith.constant dense<0.000000e+00> : vector<256xf32>
    %12 = vector.multi_reduction <add>, %11, %cst_7 [0] : vector<10x256xf32> to vector<256xf32>
    %13 = vector.shape_cast %12 : vector<256xf32> to vector<1x256xf32>
    %c0_8 = arith.constant 0 : index
    %c0_9 = arith.constant 0 : index
    %14 = memref.load %arg4[%c0_8, %c0_9] : memref<1x1xf32, #tpu.memory_space<smem>>
    %15 = vector.broadcast %14 : f32 to vector<1x256xf32>
    %16 = arith.addf %13, %15 : vector<1x256xf32>
    %c0_10 = arith.constant 0 : index
    %c0_11 = arith.constant 0 : index
    %17 = vector.load %arg5[%c0_10, %c0_11] : memref<1x256xf32, #tpu.memory_space<vmem>>, vector<1x256xf32>
    tpu.vector_store %arg5[%c0_10, %c0_11], %16 {strides = array<i32>} : memref<1x256xf32, #tpu.memory_space<vmem>>, vector<1x256xf32>,
    return
  }
  func.func @transform_0(%arg0: i32) -> (i32, i32) {
    %c0_i32 = arith.constant 0 : i32
    %c0_i32_0 = arith.constant 0 : i32
    return %arg0, %c0_i32 : i32, i32
  }
  func.func @transform_1(%arg0: i32) -> (i32, i32) {
    %c0_i32 = arith.constant 0 : i32
    %c0_i32_0 = arith.constant 0 : i32
    %c0_i32_1 = arith.constant 0 : i32
    return %c0_i32, %c0_i32_0 : i32, i32
  }
  func.func @transform_2(%arg0: i32) -> (i32, i32) {
    %c0_i32 = arith.constant 0 : i32
    %c0_i32_0 = arith.constant 0 : i32
    %c0_i32_1 = arith.constant 0 : i32
    return %c0_i32, %c0_i32_0 : i32, i32
  }
  func.func @transform_3(%arg0: i32) -> (i32, i32) {
    %c0_i32 = arith.constant 0 : i32
    %c0_i32_0 = arith.constant 0 : i32
    %c0_i32_1 = arith.constant 0 : i32
    return %c0_i32, %c0_i32_0 : i32, i32
  }
  func.func @transform_4(%arg0: i32) -> (i32, i32) {
    %c0_i32 = arith.constant 0 : i32
    %c0_i32_0 = arith.constant 0 : i32
    return %c0_i32, %arg0 : i32, i32
  }
}

</mosaic_0001>

<llo_original>
// kernel: bpnn_forward.1
$region0: #{bpnn_forward.1}
  #allocation0 [shape = 'u32[]', space=smem, size = 0x4, offset = 0x4, fixed_abs, tag = 'smem constant byte address 0x4 - core index']
  #allocation1 [shape = 'u32[144,128]{1,0:T(1,128)}', space=vmem, size = 0x12000, scoped, tag = 'internal scratch']
  #allocation2 [shape = 'f32[1,1]{1,0:T(1,128)S(6)}', space=smem, size = 0x200, scoped, tag = 'scoped memory for bpnn_forward.1']
  %s0 = inlined_call_operand.vmem [shape: f32[500,32], index: 0, kind: input, shape index: {}]
  %s1 = inlined_call_operand.vmem [shape: bf16[10,32], index: 1, kind: input, shape index: {}]
  %s2 = inlined_call_operand.vmem [shape: f32[10,2], index: 2, kind: input, shape index: {}]
  %s3 = inlined_call_operand.<no memory space> [shape: f32[1,1], index: 3, kind: input, shape index: {}]
  %s4 = inlined_call_operand.hbm [shape: f32[1,500], index: 4, kind: output, shape index: {}]
  %s5 = sld [smem:[#allocation0]]
  $region49: #{bpnn_forward.1} parent=0
    _
  %s7 = ssub.s32 1, %s5
  %s8 = scalar_select 0, %s7, %s5
  %9 = sst [smem:[#allocation2]] %s3
  $region1: #{bpnn_forward.1} parent=0
    #allocation3 [shape = 'u8[2048]{0}', space=vmem, size = 0x800, scoped, tag = 'output window, operand 0']
    #allocation4 [shape = 's32[2]{0}', space=sflag, size = 0x8, scoped, tag = 'scoped memory for bpnn_forward.1']
    %10 = vsyncpa [#allocation4], 0
    %s11 = scalar_lea.sflag [#allocation4], 1
    %12 = vsyncpa %s11, 0
    loop: start=0, step=1, limit=4
    $region2: #{bpnn_forward.1} parent=1 // loop_pre_header
      _
    $region3: #{bpnn_forward.1} parent=1 // loop_header
      %s14 = sphi 0, %s18
      %p15 = scmp.ge.s32.totalorder %s14, 4
      %s24 = sphi 0, %s26
      %s27 = sphi 0, %s24
      %s28 = sphi 0, %s27
      %s44 = sphi 0, %s28
      %s48 = sphi 0, %s48
      %s50 = sphi 0, %s48
      %s51 = sphi 0, %s50
      %s65 = sphi 0, %s51
      %s69 = sphi 0, %s69
      %s71 = sphi 0, %s69
      %s72 = sphi 0, %s71
      %s86 = sphi 0, %s72
      %s90 = sphi 0, %s90
      %s92 = sphi 0, %s90
      %s93 = sphi 0, %s92
      %s107 = sphi 0, %s93
      %s113 = sphi 0, %s115
      %s116 = sphi 0, %s113
      %s117 = sphi 0, %s116
      %s133 = sphi 0, %s117
    $region4: #{bpnn_forward.1} parent=1 // loop_header_branch
      %17 = sbr.rel (%p15) target = $region8
    $region5: #{bpnn_forward.1} parent=1 // loop_body
      %s19 = ssub.s32 %s14, 1
      %s20 = ssub.s32 %s14, 2
      %s21 = sadd.s32 %s14, 1
      %s22 = ssub.s32 %s14, %s21
      %p23 = scmp.eq.s32.totalorder %s22, 0
      %s25 = sadd.s32 %s24, 1
      %s26 = scalar_select %p23, %s24, %s25
      %p29 = pneg %p23
      %p30 = scmp.eq.s32.totalorder %s14, 1
      %p31 = por %p29, %p30
      %p32 = scmp.ne.s32.totalorder %s24, %s27
      %p33 = scmp.eq.s32.totalorder %s14, 0
      %p34 = por %p32, %p33
      %p35 = scmp.ne.s32.totalorder %s24, %s27
      %p36 = scmp.eq.s32.totalorder %s19, 1
      %p37 = por %p35, %p36
      %p38 = scmp.ne.s32.totalorder %s27, %s28
      %p39 = scmp.eq.s32.totalorder %s19, 0
      %p40 = por %p38, %p39
      %p41 = scmp.ne.s32.totalorder %s27, %s28
      %p42 = scmp.eq.s32.totalorder %s20, 1
      %p43 = por %p41, %p42
      %p45 = scmp.ne.s32.totalorder %s28, %s44
      %p46 = scmp.eq.s32.totalorder %s20, 0
      %p47 = por %p45, %p46
      %s49 = sadd.s32 %s48, 1
      %p52 = scmp.eq.s32.totalorder %s14, 1
      %p53 = scmp.ne.s32.totalorder %s48, %s50
      %p54 = scmp.eq.s32.totalorder %s14, 0
      %p55 = por %p53, %p54
      %p56 = scmp.ne.s32.totalorder %s48, %s50
      %p57 = scmp.eq.s32.totalorder %s19, 1
      %p58 = por %p56, %p57
      %p59 = scmp.ne.s32.totalorder %s50, %s51
      %p60 = scmp.eq.s32.totalorder %s19, 0
      %p61 = por %p59, %p60
      %p62 = scmp.ne.s32.totalorder %s50, %s51
      %p63 = scmp.eq.s32.totalorder %s20, 1
      %p64 = por %p62, %p63
      %p66 = scmp.ne.s32.totalorder %s51, %s65
      %p67 = scmp.eq.s32.totalorder %s20, 0
      %p68 = por %p66, %p67
      %s70 = sadd.s32 %s69, 1
      %p73 = scmp.eq.s32.totalorder %s14, 1
      %p74 = scmp.ne.s32.totalorder %s69, %s71
      %p75 = scmp.eq.s32.totalorder %s14, 0
      %p76 = por %p74, %p75
      %p77 = scmp.ne.s32.totalorder %s69, %s71
      %p78 = scmp.eq.s32.totalorder %s19, 1
      %p79 = por %p77, %p78
      %p80 = scmp.ne.s32.totalorder %s71, %s72
      %p81 = scmp.eq.s32.totalorder %s19, 0
      %p82 = por %p80, %p81
      %p83 = scmp.ne.s32.totalorder %s71, %s72
      %p84 = scmp.eq.s32.totalorder %s20, 1
      %p85 = por %p83, %p84
      %p87 = scmp.ne.s32.totalorder %s72, %s86
      %p88 = scmp.eq.s32.totalorder %s20, 0
      %p89 = por %p87, %p88
      %s91 = sadd.s32 %s90, 1
      %p94 = scmp.eq.s32.totalorder %s14, 1
      %p95 = scmp.ne.s32.totalorder %s90, %s92
      %p96 = scmp.eq.s32.totalorder %s14, 0
      %p97 = por %p95, %p96
      %p98 = scmp.ne.s32.totalorder %s90, %s92
      %p99 = scmp.eq.s32.totalorder %s19, 1
      %p100 = por %p98, %p99
      %p101 = scmp.ne.s32.totalorder %s92, %s93
      %p102 = scmp.eq.s32.totalorder %s19, 0
      %p103 = por %p101, %p102
      %p104 = scmp.ne.s32.totalorder %s92, %s93
      %p105 = scmp.eq.s32.totalorder %s20, 1
      %p106 = por %p104, %p105
      %p108 = scmp.ne.s32.totalorder %s93, %s107
      %p109 = scmp.eq.s32.totalorder %s20, 0
      %p110 = por %p108, %p109
      %s111 = ssub.s32 %s14, %s21
      %p112 = scmp.eq.s32.totalorder %s111, 0
      %s114 = sadd.s32 %s113, 1
      %s115 = scalar_select %p112, %s113, %s114
      %p118 = pneg %p112
      %p119 = scmp.eq.s32.totalorder %s14, 1
      %p120 = por %p118, %p119
      %p121 = scmp.ne.s32.totalorder %s113, %s116
      %p122 = scmp.eq.s32.totalorder %s14, 0
      %p123 = por %p121, %p122
      %p124 = scmp.ne.s32.totalorder %s113, %s116
      %p125 = scmp.eq.s32.totalorder %s19, 1
      %p126 = por %p124, %p125
      %p127 = scmp.ne.s32.totalorder %s116, %s117
      %p128 = scmp.eq.s32.totalorder %s19, 0
      %p129 = por %p127, %p128
      %p130 = scmp.ne.s32.totalorder %s116, %s117
      %p131 = scmp.eq.s32.totalorder %s20, 1
      %p132 = por %p130, %p131
      %p134 = scmp.ne.s32.totalorder %s117, %s133
      %p135 = scmp.eq.s32.totalorder %s20, 0
      %p136 = por %p134, %p135
      %p137 = scmp.le.s32.totalorder 1, %s14
      %p138 = scmp.lt.s32.totalorder %s14, 3
      %p139 = pnand %p137, %p138
      %p140 = pneg %p139
      // Predicated region
      $region9: #{bpnn_forward.1} parent=5 // pred_check
        _
      $region10: #{bpnn_forward.1} parent=5 // pred_check_branch
        %142 = sbr.rel (%p139) target = $region12
      $region11: #{bpnn_forward.1} parent=5 // pred_region
        %s143 = ssub.s32 %s14, 1
        // Predicated region
        $region13: #{bpnn_forward.1} parent=11 // pred_check
          %p144 = pneg %p61
        $region14: #{bpnn_forward.1} parent=11 // pred_check_branch
          %146 = sbr.rel (%p144) target = $region16
        $region15: #{bpnn_forward.1} parent=11 // pred_region
          _
        $region16: #{bpnn_forward.1} parent=11 // pred_fallthru
          _
        // Predicated region
        $region17: #{bpnn_forward.1} parent=11 // pred_check
          %p147 = pneg %p82
        $region18: #{bpnn_forward.1} parent=11 // pred_check_branch
          %149 = sbr.rel (%p147) target = $region20
        $region19: #{bpnn_forward.1} parent=11 // pred_region
          _
        $region20: #{bpnn_forward.1} parent=11 // pred_fallthru
          _
        // Predicated region
        $region21: #{bpnn_forward.1} parent=11 // pred_check
          %p150 = pneg %p103
        $region22: #{bpnn_forward.1} parent=11 // pred_check_branch
          %152 = sbr.rel (%p150) target = $region24
        $region23: #{bpnn_forward.1} parent=11 // pred_region
          _
        $region24: #{bpnn_forward.1} parent=11 // pred_fallthru
          _
      $region12: #{bpnn_forward.1} parent=5 // pred_fallthru
        _
      %p153 = scmp.lt.s32.totalorder %s14, 2
      // Predicated region
      $region25: #{bpnn_forward.1} parent=5 // pred_check
        %p154 = pneg %p153
      $region26: #{bpnn_forward.1} parent=5 // pred_check_branch
        %156 = sbr.rel (%p154) target = $region28
      $region27: #{bpnn_forward.1} parent=5 // pred_region
        // Predicated region
        $region29: #{bpnn_forward.1} parent=27 // pred_check
          %p157 = pneg %p34
        $region30: #{bpnn_forward.1} parent=27 // pred_check_branch
          %159 = sbr.rel (%p157) target = $region32
        $region31: #{bpnn_forward.1} parent=27 // pred_region
          %s160 = smul.u32 32, %s14
          %s161 = ssub.s32 63, %s160
          %p162 = scmp.lt.s32.totalorder %s161, 32
          %s163 = scalar_select %p162, %s161, 32
          %s164 = smul.u32 128, %s163
          %p165 = scmp.lt.s32.totalorder %s160, 62
          %s166 = scalar_select %p165, %s160, 62
          %s167 = smul.addr %s166, 8
          %s168 = scalar_lea.vmem %s0, %s167
          %s169 = smul.u32 32, %s14
          %s170 = ssub.s32 63, %s169
          %p171 = scmp.lt.s32.totalorder %s170, 32
          %s172 = scalar_select %p171, %s170, 32
          %s173 = smul.u32 128, %s172
        $region32: #{bpnn_forward.1} parent=27 // pred_fallthru
          _
      $region28: #{bpnn_forward.1} parent=5 // pred_fallthru
        _
      %p174 = scmp.le.s32.totalorder 1, %s14
      %p175 = scmp.lt.s32.totalorder %s14, 3
      %p176 = pnand %p174, %p175
      %p177 = pneg %p176
      // Predicated region
      $region33: #{bpnn_forward.1} parent=5 // pred_check
        _
      $region34: #{bpnn_forward.1} parent=5 // pred_check_branch
        %179 = sbr.rel (%p176) target = $region36
      $region35: #{bpnn_forward.1} parent=5 // pred_region
        %s180 = ssub.s32 %s14, 1
        %s181 = smul.u32 32, %s19
        %s182 = ssub.s32 63, %s181
        %p183 = scmp.lt.s32.totalorder %s182, 32
        %s184 = scalar_select %p183, %s182, 32
        %s185 = smul.u32 128, %s184
        %p186 = scmp.lt.s32.totalorder %s181, 62
        %s187 = scalar_select %p186, %s181, 62
        %s188 = smul.addr %s187, 8
        %s189 = scalar_lea.vmem %s0, %s188
        %p190 = pneg %p40
        %p191 = pneg %p37
        %p192 = pneg %p61
        %p193 = pneg %p58
        %p194 = pneg %p82
        %p195 = pneg %p79
        %p196 = pneg %p103
        %p197 = pneg %p100
        %p198 = pneg %p129
        %p199 = pneg %p126
        %s200 = sand.u32 %s116, 1
        %s201 = scalar_lea.sflag [#allocation4], %s200
        %s202 = sand.u32 %s116, 1
        %s203 = smul.addr %s202, 2
        %s204 = scalar_lea.vmem [#allocation3], %s203
        %s205 = smul.u32 32, %s19
        %s206 = ssub.s32 63, %s205
        %p207 = scmp.lt.s32.totalorder %s206, 32
        %s208 = scalar_select %p207, %s206, 32
        %s209 = smul.u32 128, %s208
        %p210 = scmp.lt.s32.totalorder %s205, 62
        %s211 = scalar_select %p210, %s205, 62
        %s212 = smul.addr %s211, 8
        %s213 = scalar_lea.vmem %s0, %s212
        %s214 = smul.u32 32, %s19
        %s215 = ssub.s32 63, %s214
        %p216 = scmp.lt.s32.totalorder %s215, 32
        %s217 = scalar_select %p216, %s215, 32
        %s218 = smul.u32 128, %s217
        %s219 = smul.u32 2, %s19
        %v221 = vld [vmem:[%s213] sm:$0xff]
        %v222 = vld [vmem:[%s213 + $0x8] sm:$0xff]
        %v223 = vld [vmem:[%s213 + $0x10] sm:$0xff]
        %v224 = vld [vmem:[%s213 + $0x18] sm:$0xff]
        %v225 = vld [vmem:[%s213 + $0x20] sm:$0xff]
        %v226 = vld [vmem:[%s213 + $0x28] sm:$0xff]
        %v227 = vld [vmem:[%s213 + $0x30] sm:$0xff]
        %v228 = vld [vmem:[%s213 + $0x38] sm:$0xff]
        %v229 = vld [vmem:[%s213 + $0x40] sm:$0xff]
        %v230 = vld [vmem:[%s213 + $0x48] sm:$0xff]
        %v231 = vld [vmem:[%s213 + $0x50] sm:$0xff]
        %v232 = vld [vmem:[%s213 + $0x58] sm:$0xff]
        %v233 = vld [vmem:[%s213 + $0x60] sm:$0xff]
        %v234 = vld [vmem:[%s213 + $0x68] sm:$0xff]
        %v235 = vld [vmem:[%s213 + $0x70] sm:$0xff]
        %v236 = vld [vmem:[%s213 + $0x78] sm:$0xff]
        %v237 = vld [vmem:[%s213 + $0x80] sm:$0xff]
        %v238 = vld [vmem:[%s213 + $0x88] sm:$0xff]
        %v239 = vld [vmem:[%s213 + $0x90] sm:$0xff]
        %v240 = vld [vmem:[%s213 + $0x98] sm:$0xff]
        %v241 = vld [vmem:[%s213 + $0xa0] sm:$0xff]
        %v242 = vld [vmem:[%s213 + $0xa8] sm:$0xff]
        %v243 = vld [vmem:[%s213 + $0xb0] sm:$0xff]
        %v244 = vld [vmem:[%s213 + $0xb8] sm:$0xff]
        %v245 = vld [vmem:[%s213 + $0xc0] sm:$0xff]
        %v246 = vld [vmem:[%s213 + $0xc8] sm:$0xff]
        %v247 = vld [vmem:[%s213 + $0xd0] sm:$0xff]
        %v248 = vld [vmem:[%s213 + $0xd8] sm:$0xff]
        %v249 = vld [vmem:[%s213 + $0xe0] sm:$0xff]
        %v250 = vld [vmem:[%s213 + $0xe8] sm:$0xff]
        %v251 = vld [vmem:[%s213 + $0xf0] sm:$0xff]
        %v252 = vld [vmem:[%s213 + $0xf8] sm:$0xff]
        %v253 = vpack.c.bf16 %v222, %v221
        %v254 = vpack.c.bf16 %v224, %v223
        %v255 = vpack.c.bf16 %v226, %v225
        %v256 = vpack.c.bf16 %v228, %v227
        %v257 = vpack.c.bf16 %v230, %v229
        %v258 = vpack.c.bf16 %v232, %v231
        %v259 = vpack.c.bf16 %v234, %v233
        %v260 = vpack.c.bf16 %v236, %v235
        %v261 = vpack.c.bf16 %v238, %v237
        %v262 = vpack.c.bf16 %v240, %v239
        %v263 = vpack.c.bf16 %v242, %v241
        %v264 = vpack.c.bf16 %v244, %v243
        %v265 = vpack.c.bf16 %v246, %v245
        %v266 = vpack.c.bf16 %v248, %v247
        %v267 = vpack.c.bf16 %v250, %v249
        %v268 = vpack.c.bf16 %v252, %v251
        %v269 = vld [vmem:[%s1] sm:$0xf]
        %v270 = vld [vmem:[%s1 + $0x4] sm:$0x1]
        %v271 = vld [vmem:[%s2] sm:$0xff]
        %v272 = vld [vmem:[%s2 + $0x8] sm:$0x3]
        %274 = vset.pattern.permute.xlu0 0
        %275 = vperm.xlu0 %274, %v271
        %v276 = vpop.permute.xlu0 %275
        %279 = vset.pattern.permute.xlu0 0
        %280 = vperm.xlu0 %279, %v272
        %v281 = vpop.permute.xlu0 %280
        %v285 = vunpack.c.l.b16 %v269
        %v286 = vunpack.c.l.b16 %v270
        %v287 = vpack.c.b16 %v286, %v285
        %vm288 = vcmask 261120
        %v290 = vsel %vm288, %v287, 0
        %v293 = vsel %vm288, %v253, 0
        %v296 = vsel %vm288, %v254, 0
        %v299 = vsel %vm288, %v255, 0
        %v302 = vsel %vm288, %v256, 0
        %v305 = vsel %vm288, %v257, 0
        %v308 = vsel %vm288, %v258, 0
        %v311 = vsel %vm288, %v259, 0
        %v314 = vsel %vm288, %v260, 0
        %v317 = vsel %vm288, %v261, 0
        %v320 = vsel %vm288, %v262, 0
        %v323 = vsel %vm288, %v263, 0
        %v326 = vsel %vm288, %v264, 0
        %v329 = vsel %vm288, %v265, 0
        %v332 = vsel %vm288, %v266, 0
        %v335 = vsel %vm288, %v267, 0
        %v338 = vsel %vm288, %v268, 0
        %340 = vmatprep.subr.bf16.mxu0 0
        %341 = vmatpush1.bf16.xpose.msra.mxu0 %v293
        %342 = vmatprep.subr.bf16.mxu0 0
        %343 = vmatpush1.bf16.xpose.msra.mxu0 %v296
        %344 = vmatprep.subr.bf16.mxu0 0
        %345 = vmatpush1.bf16.xpose.msra.mxu0 %v299
        %346 = vmatprep.subr.bf16.mxu0 0
        %347 = vmatpush1.bf16.xpose.msra.mxu0 %v302
        %348 = vmatprep.subr.bf16.mxu0 0
        %349 = vmatpush1.bf16.xpose.msra.mxu0 %v305
        %350 = vmatprep.subr.bf16.mxu0 0
        %351 = vmatpush1.bf16.xpose.msra.mxu0 %v308
        %352 = vmatprep.subr.bf16.mxu0 0
        %353 = vmatpush1.bf16.xpose.msra.mxu0 %v311
        %354 = vmatprep.subr.bf16.mxu0 0
        %355 = vmatpush1.bf16.xpose.msra.mxu0 %v314
        %356 = vmatprep.subr.bf16.mxu0 0
        %357 = vmatpush1.bf16.xpose.msra.mxu0 %v317
        %358 = vmatprep.subr.bf16.mxu0 0
        %359 = vmatpush1.bf16.xpose.msra.mxu0 %v320
        %360 = vmatprep.subr.bf16.mxu0 0
        %361 = vmatpush1.bf16.xpose.msra.mxu0 %v323
        %362 = vmatprep.subr.bf16.mxu0 0
        %363 = vmatpush1.bf16.xpose.msra.mxu0 %v326
        %364 = vmatprep.subr.bf16.mxu0 0
        %365 = vmatpush1.bf16.xpose.msra.mxu0 %v329
        %366 = vmatprep.subr.bf16.mxu0 0
        %367 = vmatpush1.bf16.xpose.msra.mxu0 %v332
        %368 = vmatprep.subr.bf16.mxu0 0
        %369 = vmatpush1.bf16.xpose.msra.mxu0 %v335
        %370 = vmatprep.subr.bf16.mxu0 0
        %371 = vmatpush1.bf16.xpose.msra.mxu0 %v338
        %372 = vmatprep.mubr.bf16.mxu0 0
        %373 = vmatmul.mubr.bf16.gmra.mrb[0].mxu0 %v290
        %v374 = vpop.f32.mrb[0].mxu0
        %v375 = vadd.f32 %v276, %v374
        %v376 = vpop.f32.mrb[0].mxu0
        %v377 = vadd.f32 %v276, %v376
        %v378 = vpop.f32.mrb[0].mxu0
        %v379 = vadd.f32 %v281, %v378
        %v380 = vpop.f32.mrb[0].mxu0
        %v381 = vadd.f32 %v281, %v380
        %382 = vdwg.mxu0
        %v383 = vmax.f32 %v375, 0.0
        %v384 = vmax.f32 %v377, 0.0
        %v385 = vmax.f32 %v379, 0.0
        %v386 = vmax.f32 %v381, 0.0
        %387 = vset.pattern.permute.xlu0 1
        %388 = vperm.xlu0 %387, %v271
        %v389 = vpop.permute.xlu0 %388
        %391 = vset.pattern.permute.xlu0 1
        %392 = vperm.xlu0 %391, %v272
        %v393 = vpop.permute.xlu0 %392
        %v395 = vmul.f32 %v383, %v389
        %v396 = vmul.f32 %v384, %v389
        %v397 = vmul.f32 %v385, %v393
        %v398 = vmul.f32 %v386, %v393
        %vm399 = vcmask 1041408
        %v400 = vsel %vm399, %v397, 0.0
        %v401 = vadd.f32 %v395, %v400
        %v402 = vrot.slane %v401, 4
        %v403 = vadd.f32 %v401, %v402
        %v404 = vrot.slane %v403, 2
        %v405 = vadd.f32 %v403, %v404
        %v406 = vrot.slane %v405, 1
        %v407 = vadd.f32 %v405, %v406
        %v408 = vsel %vm399, %v398, 0.0
        %v409 = vadd.f32 %v396, %v408
        %v410 = vrot.slane %v409, 4
        %v411 = vadd.f32 %v409, %v410
        %v412 = vrot.slane %v411, 2
        %v413 = vadd.f32 %v411, %v412
        %v414 = vrot.slane %v413, 1
        %v415 = vadd.f32 %v413, %v414
        %s416 = sld [smem:[#allocation2]]
        %v417 = vstv %s416
        %v418 = vadd.f32 %v407, %v417
        %v419 = vadd.f32 %v415, %v417
        %v422 = vcombine.low %v418, %v419
        %v424 = vunpack.c.l.s4 1966171168
        %v425 = vunpack.c.0.s8 %v424
        %v426 = vlaneseq
        %v427 = vshrl.u32 %v426, 7
        %v428 = vsub.s32 %v425, %v427
        %v429 = vrot.slane %v422, %v428
        %v431 = vunpack.c.l.s4 1966171168
        %v432 = vunpack.c.0.s8 %v431
        %v433 = vlaneseq
        %v434 = vshrl.u32 %v433, 7
        %v435 = vsub.s32 %v432, %v434
        %v436 = vrot.slane %v429, %v435
        %v438 = vlaneseq
        %vm439 = vcmp.ge.s32.totalorder %v438, 0
        %vm440 = vcmp.lt.s32.totalorder %v438, 256
        %vm441 = vmand %vm439, %vm440
        %442 = vst.msk [vmem:[%s204] sm:$0x3] %vm441, %v436
        %s443 = sand.u32 %s116, 1
        %s444 = scalar_lea.sflag [#allocation4], %s443
        %s445 = sand.u32 %s116, 1
        %s446 = smul.addr %s445, 2
        %s447 = scalar_lea.vmem [#allocation3], %s446
        // Predicated region
        $region37: #{bpnn_forward.1} parent=35 // pred_check
          %p448 = pneg %p126
        $region38: #{bpnn_forward.1} parent=35 // pred_check_branch
          %450 = sbr.rel (%p448) target = $region40
        $region39: #{bpnn_forward.1} parent=35 // pred_region
          %s451 = smul.u32 2, %s19
          %s453 = ssub.s32 32, 32
          %454 = vsyncadd %s444, %s453
          %s455 = smul.addr %s451, 16
          %s456 = scalar_lea.hbm %s4, %s455
          %s458 = sshll.u32 %s447, 4
          %s459 = int_to_ptr.vmem [resolvable:$true] %s458
          %461 = dma.vmem_to_hbm [thread:$0]  %s459, 32, %s456, %s444
        $region40: #{bpnn_forward.1} parent=35 // pred_fallthru
          _
      $region36: #{bpnn_forward.1} parent=5 // pred_fallthru
        _
      %p462 = scmp.le.s32.totalorder 2, %s14
      // Predicated region
      $region41: #{bpnn_forward.1} parent=5 // pred_check
        %p463 = pneg %p462
      $region42: #{bpnn_forward.1} parent=5 // pred_check_branch
        %465 = sbr.rel (%p463) target = $region44
      $region43: #{bpnn_forward.1} parent=5 // pred_region
        %s466 = ssub.s32 %s14, 2
        // Predicated region
        $region45: #{bpnn_forward.1} parent=43 // pred_check
          %p467 = pneg %p132
        $region46: #{bpnn_forward.1} parent=43 // pred_check_branch
          %469 = sbr.rel (%p467) target = $region48
        $region47: #{bpnn_forward.1} parent=43 // pred_region
          %s470 = sand.u32 %s117, 1
          %s471 = scalar_lea.sflag [#allocation4], %s470
          %s472 = sand.u32 %s117, 1
          %s473 = smul.addr %s472, 2
          %s474 = scalar_lea.vmem [#allocation3], %s473
          %475 = dma.done %s471, 32
        $region48: #{bpnn_forward.1} parent=43 // pred_fallthru
          _
      $region44: #{bpnn_forward.1} parent=5 // pred_fallthru
        _
    $region6: #{bpnn_forward.1} parent=1 // loop_footer
      %s18 = sadd.s32 1, %s14
    $region7: #{bpnn_forward.1} parent=1 // loop_footer_branch
      %13 = sbr.rel target = $region3
    $region8: #{bpnn_forward.1} parent=1 // loop_exit
      _
    %476 = vsyncpa [#allocation4], 1
    %s477 = scalar_lea.sflag [#allocation4], 1
    %478 = vsyncpa %s477, 1

</llo_original>
